<compile_context>
chip_gen: v7x
topology: tpu7x:2x2x1
jax: 0.10.0
libtpu: 0.0.40
codegen_flags: <defaults>
</compile_context>

<pallas_src>
import jax
import jax.numpy as jnp
from jax import lax
from jax.experimental import pallas as pl
from jax.experimental.pallas import tpu as pltpu


_LANE = 128
_TILE_BYTES = 4 * 1024 * 1024   # ~4 MiB per logits block (8 MiB double-buffered)


def _ceil_to(x, m):
    return -(-x // m) * m


def _stable_sigmoid_softplus(x):
    """sigmoid(x), softplus(x), softplus(-x) from one shared exp(-|x|).

    approx reciprocal + one Newton refinement (VALU FMA) keeps the EUP at
    ~3 pushes per element: exp, rcp(approx), log1p.
    """
    ax = jnp.abs(x)
    e = jnp.exp(-ax)                         # exp(-|x|) in (0, 1]
    d = 1.0 + e
    r = pl.reciprocal(d, approx=True)
    r = r * (2.0 - d * r)                    # Newton step, ~1e-7 relative error
    sig = jnp.where(x >= 0.0, r, e * r)      # sigmoid(x), numerically stable
    lg = jnp.log1p(e)
    sp_pos = jnp.maximum(x, 0.0) + lg        # softplus(x)
    sp_neg = jnp.maximum(-x, 0.0) + lg       # softplus(-x)
    return sig, sp_pos, sp_neg


# ------------------------------ fused kernel ------------------------------- #

def _make_fused_kernel(q_total, tile_q, needs_mask, alpha=0.25):
    """One kernel per decoder layer.

    Every grid step (b, t) accumulates the dense background class term for a
    (1, tile_q, C) logits tile into a resident (1, 1, C) VMEM accumulator.
    Grid step (0, 0) additionally computes the matched-pair L1 / GIoU sums and
    the sparse positive-class correction from the lane-major (16, P) pair slab
    and writes them once into a (1, 128) resident block (lanes 0/1/2).
    """
    def kernel(x_ref, pair_ref, acc_ref, pout_ref):
        first = (pl.program_id(0) == 0) & (pl.program_id(1) == 0)

        @pl.when(first)
        def _init():
            acc_ref[...] = jnp.zeros_like(acc_ref)

            pr = pair_ref[...]                       # (16, P) f32, lane-major
            sb, tb = pr[0:4, :], pr[4:8, :]          # (4, P) cx, cy, w, h rows
            xq, m = pr[8:9, :], pr[9:10, :]          # (1, P) matched logit, mask

            def xyxy(b):
                cx, cy, w, h = b[0:1], b[1:2], b[2:3], b[3:4]
                return cx - 0.5 * w, cy - 0.5 * h, cx + 0.5 * w, cy + 0.5 * h

            sx0, sy0, sx1, sy1 = xyxy(sb)
            tx0, ty0, tx1, ty1 = xyxy(tb)
            sa = (sx1 - sx0) * (sy1 - sy0)
            ta = (tx1 - tx0) * (ty1 - ty0)
            inter = (jnp.maximum(jnp.minimum(sx1, tx1) - jnp.maximum(sx0, tx0), 0.0)
                     * jnp.maximum(jnp.minimum(sy1, ty1) - jnp.maximum(sy0, ty0), 0.0))
            union = sa + ta - inter
            iou = inter / jnp.where(union > 0.0, union, 1.0)
            earea = ((jnp.maximum(sx1, tx1) - jnp.minimum(sx0, tx0))
                     * (jnp.maximum(sy1, ty1) - jnp.minimum(sy0, ty0)))
            # NOTE: guarded division; the unguarded reference only differs for
            # degenerate (zero-area enclosing) boxes.
            giou = iou - (earea - union) / jnp.where(earea > 0.0, earea, 1.0)

            l1_sum = jnp.sum(jnp.abs(sb - tb) * m)
            giou_sum = jnp.sum((1.0 - giou) * m)

            # ---- sparse positive correction w.r.t. the dense background term.
            # True loss at a matched (b, q, class) entry:
            #   (t-p)^2*softplus(-x) + (1-t)*p^2*softplus(x)
            # Background kernel already counted p^2*softplus(x), so add
            #   (t-p)^2*softplus(-x) - t*p^2*softplus(x).
            prob, sp_pos, sp_neg = _stable_sigmoid_softplus(xq)
            iou_c = jnp.maximum(iou, 0.01)
            # prob**alpha * iou**(1-alpha) via exp/log (avoids fractional powf).
            tsc = jnp.exp(alpha * jnp.log(prob) + (1.0 - alpha) * jnp.log(iou_c))
            tsc = jnp.maximum(tsc, 0.1)
            dtp = tsc - prob
            corr = dtp * dtp * sp_neg - tsc * (prob * prob) * sp_pos
            ce_sum = jnp.sum(corr * m)

            lane = lax.broadcasted_iota(jnp.int32, (1, _LANE), 1)
            pout_ref[...] = (jnp.where(lane == 0, l1_sum, 0.0)
                             + jnp.where(lane == 1, giou_sum, 0.0)
                             + jnp.where(lane == 2, ce_sum, 0.0))

        # ---- dense background term on the native-layout logits tile.
        x = x_ref[...].astype(jnp.float32)           # (1, tile_q, C)
        if needs_mask:                                # static Python branch
            q0 = pl.program_id(1) * tile_q
            qi = lax.broadcasted_iota(jnp.int32, x.shape, 1)
            x = jnp.where(q0 + qi < q_total, x, -1e4)  # tail -> exactly 0 loss
        p, sp, _ = _stable_sigmoid_softplus(x)
        loss = p * p * sp
        acc_ref[...] += jnp.sum(loss, axis=(0, 1), keepdims=True)

    return kernel


def _fused_layer_losses(logits, src_boxes, tgt_boxes, x_pos):
    """One pallas_call per decoder layer: dense class background term over the
    full (B, Q, C) logits (native layout/dtype, read once from HBM) fused with
    the matched-pair L1 / GIoU / positive-class correction at grid step 0."""
    B, Q, C = logits.shape
    M = src_boxes.shape[0]

    # Matched pairs, lane-major: rows 0-3 src cxcywh, 4-7 tgt cxcywh,
    # 8 matched positive logit, 9 validity mask; lanes padded to 128.
    # TODO(synk): duplicate matched (batch, query, class) entries would be
    # double-counted by the additive correction (the reference scatter
    # overwrites); the identity matcher never emits duplicates.
    P = _ceil_to(max(M, 1), _LANE)
    pair = jnp.zeros((16, P), jnp.float32)
    pair = pair.at[0:4, :M].set(src_boxes.astype(jnp.float32).T)
    pair = pair.at[4:8, :M].set(tgt_boxes.astype(jnp.float32).T)
    pair = pair.at[8, :M].set(x_pos.astype(jnp.float32))
    pair = pair.at[9, :M].set(1.0)

    # Query-axis tiling: ~4 MiB per buffer (lane-padded, f32 upper bound).
    lane_bytes = _ceil_to(C, _LANE) * 4
    max_tile_q = max(8, (_TILE_BYTES // lane_bytes) // 8 * 8)
    if Q <= max_tile_q:
        tile_q, needs_mask = Q, False
    else:
        tile_q, needs_mask = max_tile_q, (Q % max_tile_q != 0)
    grid = (B, pl.cdiv(Q, tile_q))

    kernel = _make_fused_kernel(Q, tile_q, needs_mask)
    acc, pout = pl.pallas_call(
        kernel,
        grid=grid,
        in_specs=[
            pl.BlockSpec((1, tile_q, C), lambda b, t: (b, t, 0)),
            pl.BlockSpec((16, P), lambda b, t: (0, 0)),      # stays resident
        ],
        out_specs=(
            pl.BlockSpec((1, 1, C), lambda b, t: (0, 0, 0)),  # resident accumulator
            pl.BlockSpec((1, _LANE), lambda b, t: (0, 0)),    # written at step 0
        ),
        out_shape=(
            jax.ShapeDtypeStruct((1, 1, C), jnp.float32),
            jax.ShapeDtypeStruct((1, _LANE), jnp.float32),
        ),
        compiler_params=pltpu.CompilerParams(
            # Resident accumulator => both grid axes "arbitrary".
            # TODO(synk): on v7x, shard the query-tile axis across the two
            # TensorCores (CORE_PARALLEL with one accumulator block per core).
            dimension_semantics=("arbitrary", "arbitrary")),
    )(logits, pair)

    ce_sum = jnp.sum(acc) + pout[0, 2]
    return ce_sum, pout[0, 0], pout[0, 1]


# ------------------------------- criterion --------------------------------- #

class BaseCriterionPallas:
    """DETR set criterion with the loss math on a single fused Pallas kernel
    per decoder layer."""

    def __init__(self, num_classes, matcher=None, weight_dict=None):
        self.num_classes = num_classes
        # TODO(synk): Hungarian matching (scipy.linear_sum_assignment) has no
        # clean Pallas equivalent; a deterministic identity matcher is used.
        self.matcher = matcher
        self.pos_norm_type = 'softmax'
        self.weight_dict = weight_dict or {}

    def _match(self, outputs, targets):
        # identity matching: target j in image i <-> query j
        return [(jnp.arange(len(t['labels']), dtype=jnp.int32),
                 jnp.arange(len(t['labels']), dtype=jnp.int32)) for t in targets]

    def get_loss(self, outputs, targets, num_boxes, layer_spec, specify_indices=None):
        assert 'pred_boxes' in outputs
        assert 'pred_logits' in outputs
        assert layer_spec >= 0
        pred_boxes = outputs['pred_boxes']
        src_logits = outputs['pred_logits']

        if not specify_indices:
            indices = (self.matcher(outputs, targets, 1) if self.matcher is not None
                       else self._match(outputs, targets))
        else:
            indices = specify_indices

        batch_idx = jnp.concatenate(
            [jnp.full_like(s, i) for i, (s, _) in enumerate(indices)])
        src_idx = jnp.concatenate([s for (s, _) in indices])
        target_boxes = jnp.concatenate(
            [t['boxes'][tg] for t, (_, tg) in zip(targets, indices)], axis=0)
        target_classes_o = jnp.concatenate(
            [t['labels'][tg] for t, (_, tg) in zip(targets, indices)])

        src_boxes = pred_boxes[batch_idx, src_idx]                       # [M, 4]
        x_pos = src_logits[batch_idx, src_idx, target_classes_o]        # [M]

        # One fused launch: dense class background term + L1 + GIoU + sparse
        # positive-class correction.
        ce_sum, l1_sum, giou_sum = _fused_layer_losses(
            src_logits, src_boxes, target_boxes, x_pos)

        loc_weight = 1.0
        losses = {
            'loss_class': ce_sum / num_boxes,
            'loss_bbox': loc_weight * l1_sum / num_boxes,
            'loss_giou': loc_weight * giou_sum / num_boxes,
        }
        return losses, indices

    def forward(self, outputs, targets, return_indices=False):
        outputs_without_aux = {k: v for k, v in outputs.items() if k != 'aux_outputs'}
        num_layers = (len(outputs['aux_outputs']) + 1) if 'aux_outputs' in outputs else 1
        # TODO(synk): torch.distributed all_reduce / world-size normalization omitted.
        num_boxes = float(max(sum(len(t['labels']) for t in targets), 1))

        losses = {}
        l_dict, indices = self.get_loss(outputs_without_aux, targets, num_boxes, num_layers)
        losses.update(l_dict)
        if 'aux_outputs' in outputs:
            # TODO(synk): with a fixed matching, the aux decoder layers could be
            # stacked on a leading grid axis of the fused kernel (one launch for
            # all layers); with a per-layer matcher they remain per-layer calls.
            for i in range(num_layers - 1):
                l_dict, indices = self.get_loss(outputs['aux_outputs'][i], targets,
                                                num_boxes, i + 1)
                losses.update({k + f'_{i}': v for k, v in l_dict.items()})
        if return_indices:
            return losses, indices
        return losses


# --------------------------- pure-JAX reference ----------------------------- #

def _reference_losses(pred_logits, pred_boxes, targets, indices, num_boxes):
    batch_idx = jnp.concatenate([jnp.full_like(s, i) for i, (s, _) in enumerate(indices)])
    src_idx = jnp.concatenate([s for s, _ in indices])
    tgt_boxes = jnp.concatenate([t['boxes'][tg] for t, (_, tg) in zip(targets, indices)], 0)
    cls = jnp.concatenate([t['labels'][tg] for t, (_, tg) in zip(targets, indices)])
    src_boxes = pred_boxes[batch_idx, src_idx]

    def xyxy(bx):
        cx, cy, w, h = bx[:, 0], bx[:, 1], bx[:, 2], bx[:, 3]
        return jnp.stack([cx - w / 2, cy - h / 2, cx + w / 2, cy + h / 2], -1)

    a, bb = xyxy(src_boxes), xyxy(tgt_boxes)
    area_a = (a[:, 2] - a[:, 0]) * (a[:, 3] - a[:, 1])
    area_b = (bb[:, 2] - bb[:, 0]) * (bb[:, 3] - bb[:, 1])
    lt = jnp.maximum(a[:, :2], bb[:, :2])
    rb = jnp.minimum(a[:, 2:], bb[:, 2:])
    wh = jnp.maximum(rb - lt, 0.0)
    inter = wh[:, 0] * wh[:, 1]
    union = area_a + area_b - inter
    iou = inter / union
    lt2 = jnp.minimum(a[:, :2], bb[:, :2])
    rb2 = jnp.maximum(a[:, 2:], bb[:, 2:])
    wh2 = jnp.maximum(rb2 - lt2, 0.0)
    earea = wh2[:, 0] * wh2[:, 1]
    giou = iou - (earea - union) / earea

    prob = jax.nn.sigmoid(pred_logits)
    alpha, gamma = 0.25, 2.0
    ppos = prob[batch_idx, src_idx, cls]
    t = jnp.maximum(ppos ** alpha * jnp.maximum(iou, 0.01) ** (1 - alpha), 0.1)
    pos_w = jnp.zeros_like(pred_logits).at[batch_idx, src_idx, cls].set((t - ppos) ** gamma)
    neg_w = prob ** gamma
    neg_w = neg_w.at[batch_idx, src_idx, cls].set((1 - t) * ppos ** gamma)
    bce = pos_w * jax.nn.softplus(-pred_logits) + neg_w * jax.nn.softplus(pred_logits)
    return {
        'loss_class': bce.sum() / num_boxes,
        'loss_bbox': jnp.abs(src_boxes - tgt_boxes).sum() / num_boxes,
        'loss_giou': (1.0 - giou).sum() / num_boxes,
    }


# ---------------------------------- main ------------------------------------ #

if __name__ == "__main__":
    key = jax.random.PRNGKey(0)
    B, Q, C = 2, 16, 8
    k1, k2, k3, k4 = jax.random.split(key, 4)

    pred_logits = jax.random.normal(k1, (B, Q, C), jnp.float32)
    cxcy = jax.random.uniform(k2, (B, Q, 2), minval=0.25, maxval=0.75)
    wh = jax.random.uniform(k3, (B, Q, 2), minval=0.1, maxval=0.4)
    pred_boxes = jnp.concatenate([cxcy, wh], axis=-1)

    n_tgt = [3, 2]
    targets = []
    for i, n in enumerate(n_tgt):
        kk1, kk2, kk3 = jax.random.split(jax.random.fold_in(k4, i), 3)
        tcxcy = jax.random.uniform(kk1, (n, 2), minval=0.25, maxval=0.75)
        twh = jax.random.uniform(kk2, (n, 2), minval=0.1, maxval=0.4)
        labels = jax.random.randint(kk3, (n,), 0, C)
        targets.append({'boxes': jnp.concatenate([tcxcy, twh], -1), 'labels': labels})

    criterion = BaseCriterionPallas(
        num_classes=C, matcher=None,
        weight_dict={'loss_class': 1.0, 'loss_bbox': 5.0, 'loss_giou': 2.0})

    outputs = {'pred_logits': pred_logits, 'pred_boxes': pred_boxes}
    losses, indices = criterion.forward(outputs, targets, return_indices=True)
    losses = {k: jax.block_until_ready(v) for k, v in losses.items()}

    num_boxes = float(max(sum(len(t['labels']) for t in targets), 1))
    ref = _reference_losses(pred_logits, pred_boxes, targets, indices, num_boxes)
    for k in losses:
        assert jnp.isfinite(losses[k]), (k, losses[k])
        assert jnp.allclose(losses[k], ref[k], rtol=1e-4, atol=1e-5), (k, losses[k], ref[k])

    print("KERNEL_OK")
</pallas_src>

<mosaic_0001>
module attributes {stable_mosaic.version = 11 : i64} {
  func.func @kernel(%arg0: i32, %arg1: i32, %arg2: memref<1x16x8xf32, #tpu.memory_space<vmem>>, %arg3: memref<16x128xf32, #tpu.memory_space<vmem>>, %arg4: memref<1x1x8xf32, #tpu.memory_space<vmem>>, %arg5: memref<1x128xf32, #tpu.memory_space<vmem>>) attributes {dimension_semantics = [#tpu.dimension_semantics<arbitrary>, #tpu.dimension_semantics<arbitrary>], iteration_bounds = array<i64: 2, 1>, scalar_prefetch = 0 : i64, scratch_operands = 0 : i64, tpu.core_type = #tpu.core_type<tc>, window_params = [{transform_indices = @transform_0, window_bounds = array<i64: 1, 16, 8>}, {pipeline_mode = #tpu.pipeline_mode<synchronous>, transform_indices = @transform_1, window_bounds = array<i64: 16, 128>}, {pipeline_mode = #tpu.pipeline_mode<synchronous>, transform_indices = @transform_2, window_bounds = array<i64: 1, 1, 8>}, {pipeline_mode = #tpu.pipeline_mode<synchronous>, transform_indices = @transform_3, window_bounds = array<i64: 1, 128>}]} {
    %c0_i32 = arith.constant 0 : i32
    %0 = arith.cmpi eq, %arg0, %c0_i32 : i32
    %c0_i32_0 = arith.constant 0 : i32
    %1 = arith.cmpi eq, %arg1, %c0_i32_0 : i32
    %2 = arith.andi %0, %1 : i1
    %3 = arith.extui %2 : i1 to i32
    %c0_i32_1 = arith.constant 0 : i32
    %4 = arith.cmpi ne, %3, %c0_i32_1 : i32
    scf.if %4 {
      %cst_15 = arith.constant 0.000000e+00 : f32
      %32 = vector.broadcast %cst_15 : f32 to vector<1x1x8xf32>
      %c0_16 = arith.constant 0 : index
      %c0_17 = arith.constant 0 : index
      %c0_18 = arith.constant 0 : index
      %33 = vector.load %arg4[%c0_16, %c0_17, %c0_18] : memref<1x1x8xf32, #tpu.memory_space<vmem>>, vector<1x1x8xf32>
      tpu.vector_store %arg4[%c0_16, %c0_17, %c0_18], %32 {strides = array<i32>} : memref<1x1x8xf32, #tpu.memory_space<vmem>>, vector<1x1x8xf32>,
      %c0_19 = arith.constant 0 : index
      %c0_20 = arith.constant 0 : index
      %34 = vector.load %arg3[%c0_19, %c0_20] : memref<16x128xf32, #tpu.memory_space<vmem>>, vector<16x128xf32>
      %35 = vector.extract_strided_slice %34 {offsets = [0, 0], sizes = [4, 128], strides = [1, 1]} : vector<16x128xf32> to vector<4x128xf32>
      %36 = vector.extract_strided_slice %34 {offsets = [4, 0], sizes = [4, 128], strides = [1, 1]} : vector<16x128xf32> to vector<4x128xf32>
      %37 = vector.extract_strided_slice %34 {offsets = [8, 0], sizes = [1, 128], strides = [1, 1]} : vector<16x128xf32> to vector<1x128xf32>
      %38 = vector.extract_strided_slice %34 {offsets = [9, 0], sizes = [1, 128], strides = [1, 1]} : vector<16x128xf32> to vector<1x128xf32>
      %39 = vector.extract_strided_slice %35 {offsets = [0, 0], sizes = [1, 128], strides = [1, 1]} : vector<4x128xf32> to vector<1x128xf32>
      %40 = vector.extract_strided_slice %35 {offsets = [1, 0], sizes = [1, 128], strides = [1, 1]} : vector<4x128xf32> to vector<1x128xf32>
      %41 = vector.extract_strided_slice %35 {offsets = [2, 0], sizes = [1, 128], strides = [1, 1]} : vector<4x128xf32> to vector<1x128xf32>
      %42 = vector.extract_strided_slice %35 {offsets = [3, 0], sizes = [1, 128], strides = [1, 1]} : vector<4x128xf32> to vector<1x128xf32>
      %cst_21 = arith.constant 5.000000e-01 : f32
      %43 = vector.broadcast %cst_21 : f32 to vector<1x128xf32>
      %44 = arith.mulf %43, %41 : vector<1x128xf32>
      %45 = arith.subf %39, %44 : vector<1x128xf32>
      %cst_22 = arith.constant 5.000000e-01 : f32
      %46 = vector.broadcast %cst_22 : f32 to vector<1x128xf32>
      %47 = arith.mulf %46, %42 : vector<1x128xf32>
      %48 = arith.subf %40, %47 : vector<1x128xf32>
      %cst_23 = arith.constant 5.000000e-01 : f32
      %49 = vector.broadcast %cst_23 : f32 to vector<1x128xf32>
      %50 = arith.mulf %49, %41 : vector<1x128xf32>
      %51 = arith.addf %39, %50 : vector<1x128xf32>
      %cst_24 = arith.constant 5.000000e-01 : f32
      %52 = vector.broadcast %cst_24 : f32 to vector<1x128xf32>
      %53 = arith.mulf %52, %42 : vector<1x128xf32>
      %54 = arith.addf %40, %53 : vector<1x128xf32>
      %55 = vector.extract_strided_slice %36 {offsets = [0, 0], sizes = [1, 128], strides = [1, 1]} : vector<4x128xf32> to vector<1x128xf32>
      %56 = vector.extract_strided_slice %36 {offsets = [1, 0], sizes = [1, 128], strides = [1, 1]} : vector<4x128xf32> to vector<1x128xf32>
      %57 = vector.extract_strided_slice %36 {offsets = [2, 0], sizes = [1, 128], strides = [1, 1]} : vector<4x128xf32> to vector<1x128xf32>
      %58 = vector.extract_strided_slice %36 {offsets = [3, 0], sizes = [1, 128], strides = [1, 1]} : vector<4x128xf32> to vector<1x128xf32>
      %cst_25 = arith.constant 5.000000e-01 : f32
      %59 = vector.broadcast %cst_25 : f32 to vector<1x128xf32>
      %60 = arith.mulf %59, %57 : vector<1x128xf32>
      %61 = arith.subf %55, %60 : vector<1x128xf32>
      %cst_26 = arith.constant 5.000000e-01 : f32
      %62 = vector.broadcast %cst_26 : f32 to vector<1x128xf32>
      %63 = arith.mulf %62, %58 : vector<1x128xf32>
      %64 = arith.subf %56, %63 : vector<1x128xf32>
      %cst_27 = arith.constant 5.000000e-01 : f32
      %65 = vector.broadcast %cst_27 : f32 to vector<1x128xf32>
      %66 = arith.mulf %65, %57 : vector<1x128xf32>
      %67 = arith.addf %55, %66 : vector<1x128xf32>
      %cst_28 = arith.constant 5.000000e-01 : f32
      %68 = vector.broadcast %cst_28 : f32 to vector<1x128xf32>
      %69 = arith.mulf %68, %58 : vector<1x128xf32>
      %70 = arith.addf %56, %69 : vector<1x128xf32>
      %71 = arith.subf %51, %45 : vector<1x128xf32>
      %72 = arith.subf %54, %48 : vector<1x128xf32>
      %73 = arith.mulf %71, %72 : vector<1x128xf32>
      %74 = arith.subf %67, %61 : vector<1x128xf32>
      %75 = arith.subf %70, %64 : vector<1x128xf32>
      %76 = arith.mulf %74, %75 : vector<1x128xf32>
      %77 = arith.minimumf %51, %67 : vector<1x128xf32>
      %78 = arith.maximumf %45, %61 : vector<1x128xf32>
      %79 = arith.subf %77, %78 : vector<1x128xf32>
      %cst_29 = arith.constant 0.000000e+00 : f32
      %80 = vector.broadcast %cst_29 : f32 to vector<1x128xf32>
      %81 = arith.maximumf %79, %80 : vector<1x128xf32>
      %82 = arith.minimumf %54, %70 : vector<1x128xf32>
      %83 = arith.maximumf %48, %64 : vector<1x128xf32>
      %84 = arith.subf %82, %83 : vector<1x128xf32>
      %cst_30 = arith.constant 0.000000e+00 : f32
      %85 = vector.broadcast %cst_30 : f32 to vector<1x128xf32>
      %86 = arith.maximumf %84, %85 : vector<1x128xf32>
      %87 = arith.mulf %81, %86 : vector<1x128xf32>
      %88 = arith.addf %73, %76 : vector<1x128xf32>
      %89 = arith.subf %88, %87 : vector<1x128xf32>
      %cst_31 = arith.constant 0.000000e+00 : f32
      %90 = vector.broadcast %cst_31 : f32 to vector<1x128xf32>
      %91 = arith.cmpf ogt, %89, %90 : vector<1x128xf32>
      %cst_32 = arith.constant 1.000000e+00 : f32
      %92 = vector.broadcast %cst_32 : f32 to vector<1x128xf32>
      %93 = arith.select %91, %89, %92 : vector<1x128xi1>, vector<1x128xf32>
      %94 = arith.divf %87, %93 : vector<1x128xf32>
      %95 = arith.maximumf %51, %67 : vector<1x128xf32>
      %96 = arith.minimumf %45, %61 : vector<1x128xf32>
      %97 = arith.subf %95, %96 : vector<1x128xf32>
      %98 = arith.maximumf %54, %70 : vector<1x128xf32>
      %99 = arith.minimumf %48, %64 : vector<1x128xf32>
      %100 = arith.subf %98, %99 : vector<1x128xf32>
      %101 = arith.mulf %97, %100 : vector<1x128xf32>
      %102 = arith.subf %101, %89 : vector<1x128xf32>
      %cst_33 = arith.constant 0.000000e+00 : f32
      %103 = vector.broadcast %cst_33 : f32 to vector<1x128xf32>
      %104 = arith.cmpf ogt, %101, %103 : vector<1x128xf32>
      %cst_34 = arith.constant 1.000000e+00 : f32
      %105 = vector.broadcast %cst_34 : f32 to vector<1x128xf32>
      %106 = arith.select %104, %101, %105 : vector<1x128xi1>, vector<1x128xf32>
      %107 = arith.divf %102, %106 : vector<1x128xf32>
      %108 = arith.subf %94, %107 : vector<1x128xf32>
      %109 = arith.subf %35, %36 : vector<4x128xf32>
      %110 = math.absf %109 : vector<4x128xf32>
      %111 = vector.broadcast %38 : vector<1x128xf32> to vector<4x128xf32>
      %112 = arith.mulf %110, %111 : vector<4x128xf32>
      %113 = vector.shape_cast %112 : vector<4x128xf32> to vector<1x4x128xf32>
      %cst_35 = arith.constant dense<0.000000e+00> : vector<1xf32>
      %114 = vector.multi_reduction <add>, %113, %cst_35 [1, 2] : vector<1x4x128xf32> to vector<1xf32>
      %115 = vector.shape_cast %114 : vector<1xf32> to vector<1x1x1xf32>
      %116 = vector.extract %115[0, 0, 0] : f32 from vector<1x1x1xf32>
      %cst_36 = arith.constant 1.000000e+00 : f32
      %117 = vector.broadcast %cst_36 : f32 to vector<1x128xf32>
      %118 = arith.subf %117, %108 : vector<1x128xf32>
      %119 = arith.mulf %118, %38 : vector<1x128xf32>
      %120 = vector.shape_cast %119 : vector<1x128xf32> to vector<1x1x128xf32>
      %cst_37 = arith.constant dense<0.000000e+00> : vector<1xf32>
      %121 = vector.multi_reduction <add>, %120, %cst_37 [1, 2] : vector<1x1x128xf32> to vector<1xf32>
      %122 = vector.shape_cast %121 : vector<1xf32> to vector<1x1x1xf32>
      %123 = vector.extract %122[0, 0, 0] : f32 from vector<1x1x1xf32>
      %124 = math.absf %37 : vector<1x128xf32>
      %cst_38 = arith.constant 0.000000e+00 : f32
      %125 = vector.broadcast %cst_38 : f32 to vector<1x128xf32>
      %126 = arith.subf %125, %124 : vector<1x128xf32>
      %127 = math.exp %126 : vector<1x128xf32>
      %cst_39 = arith.constant 1.000000e+00 : f32
      %128 = vector.broadcast %cst_39 : f32 to vector<1x128xf32>
      %129 = arith.addf %128, %127 : vector<1x128xf32>
      %130 = tpu.reciprocal %129 {approx = true} : vector<1x128xf32> -> vector<1x128xf32>
      %131 = arith.mulf %129, %130 : vector<1x128xf32>
      %cst_40 = arith.constant 2.000000e+00 : f32
      %132 = vector.broadcast %cst_40 : f32 to vector<1x128xf32>
      %133 = arith.subf %132, %131 : vector<1x128xf32>
      %134 = arith.mulf %130, %133 : vector<1x128xf32>
      %cst_41 = arith.constant 0.000000e+00 : f32
      %135 = vector.broadcast %cst_41 : f32 to vector<1x128xf32>
      %136 = arith.cmpf oge, %37, %135 : vector<1x128xf32>
      %137 = arith.mulf %127, %134 : vector<1x128xf32>
      %138 = arith.select %136, %134, %137 : vector<1x128xi1>, vector<1x128xf32>
      %139 = math.log1p %127 : vector<1x128xf32>
      %cst_42 = arith.constant 0.000000e+00 : f32
      %140 = vector.broadcast %cst_42 : f32 to vector<1x128xf32>
      %141 = arith.maximumf %37, %140 : vector<1x128xf32>
      %142 = arith.addf %141, %139 : vector<1x128xf32>
      %cst_43 = arith.constant 0.000000e+00 : f32
      %143 = vector.broadcast %cst_43 : f32 to vector<1x128xf32>
      %144 = arith.subf %143, %37 : vector<1x128xf32>
      %cst_44 = arith.constant 0.000000e+00 : f32
      %145 = vector.broadcast %cst_44 : f32 to vector<1x128xf32>
      %146 = arith.maximumf %144, %145 : vector<1x128xf32>
      %147 = arith.addf %146, %139 : vector<1x128xf32>
      %cst_45 = arith.constant 0.00999999977 : f32
      %148 = vector.broadcast %cst_45 : f32 to vector<1x128xf32>
      %149 = arith.maximumf %94, %148 : vector<1x128xf32>
      %150 = math.log %138 : vector<1x128xf32>
      %cst_46 = arith.constant 2.500000e-01 : f32
      %151 = vector.broadcast %cst_46 : f32 to vector<1x128xf32>
      %152 = arith.mulf %151, %150 : vector<1x128xf32>
      %153 = math.log %149 : vector<1x128xf32>
      %cst_47 = arith.constant 7.500000e-01 : f32
      %154 = vector.broadcast %cst_47 : f32 to vector<1x128xf32>
      %155 = arith.mulf %154, %153 : vector<1x128xf32>
      %156 = arith.addf %152, %155 : vector<1x128xf32>
      %157 = math.exp %156 : vector<1x128xf32>
      %cst_48 = arith.constant 1.000000e-01 : f32
      %158 = vector.broadcast %cst_48 : f32 to vector<1x128xf32>
      %159 = arith.maximumf %157, %158 : vector<1x128xf32>
      %160 = arith.subf %159, %138 : vector<1x128xf32>
      %161 = arith.mulf %160, %160 : vector<1x128xf32>
      %162 = arith.mulf %161, %147 : vector<1x128xf32>
      %163 = arith.mulf %138, %138 : vector<1x128xf32>
      %164 = arith.mulf %159, %163 : vector<1x128xf32>
      %165 = arith.mulf %164, %142 : vector<1x128xf32>
      %166 = arith.subf %162, %165 : vector<1x128xf32>
      %167 = arith.mulf %166, %38 : vector<1x128xf32>
      %168 = vector.shape_cast %167 : vector<1x128xf32> to vector<1x1x128xf32>
      %cst_49 = arith.constant dense<0.000000e+00> : vector<1xf32>
      %169 = vector.multi_reduction <add>, %168, %cst_49 [1, 2] : vector<1x1x128xf32> to vector<1xf32>
      %170 = vector.shape_cast %169 : vector<1xf32> to vector<1x1x1xf32>
      %171 = vector.extract %170[0, 0, 0] : f32 from vector<1x1x1xf32>
      %172 = tpu.iota {dimensions = array<i32: 1>} : vector<1x128xi32>
      %c0_i32_50 = arith.constant 0 : i32
      %173 = vector.broadcast %c0_i32_50 : i32 to vector<1x128xi32>
      %174 = arith.cmpi eq, %172, %173 : vector<1x128xi32>
      %cst_51 = arith.constant 0.000000e+00 : f32
      %175 = vector.broadcast %116 : f32 to vector<1x128xf32>
      %176 = vector.broadcast %cst_51 : f32 to vector<1x128xf32>
      %177 = arith.select %174, %175, %176 : vector<1x128xi1>, vector<1x128xf32>
      %c1_i32 = arith.constant 1 : i32
      %178 = vector.broadcast %c1_i32 : i32 to vector<1x128xi32>
      %179 = arith.cmpi eq, %172, %178 : vector<1x128xi32>
      %cst_52 = arith.constant 0.000000e+00 : f32
      %180 = vector.broadcast %123 : f32 to vector<1x128xf32>
      %181 = vector.broadcast %cst_52 : f32 to vector<1x128xf32>
      %182 = arith.select %179, %180, %181 : vector<1x128xi1>, vector<1x128xf32>
      %183 = arith.addf %177, %182 : vector<1x128xf32>
      %c2_i32 = arith.constant 2 : i32
      %184 = vector.broadcast %c2_i32 : i32 to vector<1x128xi32>
      %185 = arith.cmpi eq, %172, %184 : vector<1x128xi32>
      %cst_53 = arith.constant 0.000000e+00 : f32
      %186 = vector.broadcast %171 : f32 to vector<1x128xf32>
      %187 = vector.broadcast %cst_53 : f32 to vector<1x128xf32>
      %188 = arith.select %185, %186, %187 : vector<1x128xi1>, vector<1x128xf32>
      %189 = arith.addf %183, %188 : vector<1x128xf32>
      %c0_54 = arith.constant 0 : index
      %c0_55 = arith.constant 0 : index
      %190 = vector.load %arg5[%c0_54, %c0_55] : memref<1x128xf32, #tpu.memory_space<vmem>>, vector<1x128xf32>
      tpu.vector_store %arg5[%c0_54, %c0_55], %189 {strides = array<i32>} : memref<1x128xf32, #tpu.memory_space<vmem>>, vector<1x128xf32>,
    } else {
    }
    %c0 = arith.constant 0 : index
    %c0_2 = arith.constant 0 : index
    %c0_3 = arith.constant 0 : index
    %5 = vector.load %arg2[%c0, %c0_2, %c0_3] : memref<1x16x8xf32, #tpu.memory_space<vmem>>, vector<1x16x8xf32>
    %6 = math.absf %5 : vector<1x16x8xf32>
    %cst = arith.constant 0.000000e+00 : f32
    %7 = vector.broadcast %cst : f32 to vector<1x16x8xf32>
    %8 = arith.subf %7, %6 : vector<1x16x8xf32>
    %9 = math.exp %8 : vector<1x16x8xf32>
    %cst_4 = arith.constant 1.000000e+00 : f32
    %10 = vector.broadcast %cst_4 : f32 to vector<1x16x8xf32>
    %11 = arith.addf %10, %9 : vector<1x16x8xf32>
    %12 = tpu.reciprocal %11 {approx = true} : vector<1x16x8xf32> -> vector<1x16x8xf32>
    %13 = arith.mulf %11, %12 : vector<1x16x8xf32>
    %cst_5 = arith.constant 2.000000e+00 : f32
    %14 = vector.broadcast %cst_5 : f32 to vector<1x16x8xf32>
    %15 = arith.subf %14, %13 : vector<1x16x8xf32>
    %16 = arith.mulf %12, %15 : vector<1x16x8xf32>
    %cst_6 = arith.constant 0.000000e+00 : f32
    %17 = vector.broadcast %cst_6 : f32 to vector<1x16x8xf32>
    %18 = arith.cmpf oge, %5, %17 : vector<1x16x8xf32>
    %19 = arith.mulf %9, %16 : vector<1x16x8xf32>
    %20 = arith.select %18, %16, %19 : vector<1x16x8xi1>, vector<1x16x8xf32>
    %21 = math.log1p %9 : vector<1x16x8xf32>
    %cst_7 = arith.constant 0.000000e+00 : f32
    %22 = vector.broadcast %cst_7 : f32 to vector<1x16x8xf32>
    %23 = arith.maximumf %5, %22 : vector<1x16x8xf32>
    %24 = arith.addf %23, %21 : vector<1x16x8xf32>
    %25 = arith.mulf %20, %20 : vector<1x16x8xf32>
    %26 = arith.mulf %25, %24 : vector<1x16x8xf32>
    %c0_8 = arith.constant 0 : index
    %c0_9 = arith.constant 0 : index
    %c0_10 = arith.constant 0 : index
    %27 = vector.load %arg4[%c0_8, %c0_9, %c0_10] : memref<1x1x8xf32, #tpu.memory_space<vmem>>, vector<1x1x8xf32>
    %cst_11 = arith.constant dense<0.000000e+00> : vector<8xf32>
    %28 = vector.multi_reduction <add>, %26, %cst_11 [0, 1] : vector<1x16x8xf32> to vector<8xf32>
    %29 = vector.shape_cast %28 : vector<8xf32> to vector<1x1x8xf32>
    %30 = arith.addf %27, %29 : vector<1x1x8xf32>
    %c0_12 = arith.constant 0 : index
    %c0_13 = arith.constant 0 : index
    %c0_14 = arith.constant 0 : index
    %31 = vector.load %arg4[%c0_12, %c0_13, %c0_14] : memref<1x1x8xf32, #tpu.memory_space<vmem>>, vector<1x1x8xf32>
    tpu.vector_store %arg4[%c0_12, %c0_13, %c0_14], %30 {strides = array<i32>} : memref<1x1x8xf32, #tpu.memory_space<vmem>>, vector<1x1x8xf32>,
    return
  }
  func.func @transform_0(%arg0: i32, %arg1: i32) -> (i32, i32, i32) {
    %c0_i32 = arith.constant 0 : i32
    %c0_i32_0 = arith.constant 0 : i32
    return %arg0, %arg1, %c0_i32 : i32, i32, i32
  }
  func.func @transform_1(%arg0: i32, %arg1: i32) -> (i32, i32) {
    %c0_i32 = arith.constant 0 : i32
    %c0_i32_0 = arith.constant 0 : i32
    %c0_i32_1 = arith.constant 0 : i32
    return %c0_i32, %c0_i32_0 : i32, i32
  }
  func.func @transform_2(%arg0: i32, %arg1: i32) -> (i32, i32, i32) {
    %c0_i32 = arith.constant 0 : i32
    %c0_i32_0 = arith.constant 0 : i32
    %c0_i32_1 = arith.constant 0 : i32
    %c0_i32_2 = arith.constant 0 : i32
    return %c0_i32, %c0_i32_0, %c0_i32_1 : i32, i32, i32
  }
  func.func @transform_3(%arg0: i32, %arg1: i32) -> (i32, i32) {
    %c0_i32 = arith.constant 0 : i32
    %c0_i32_0 = arith.constant 0 : i32
    %c0_i32_1 = arith.constant 0 : i32
    return %c0_i32, %c0_i32_0 : i32, i32
  }
}

</mosaic_0001>

<llo_original>
// kernel: tpu_custom_call.1
$region0: #{tpu_custom_call.1}
  #allocation0 [shape = 'u32[]', space=smem, size = 0x4, offset = 0x4, fixed_abs, tag = 'smem constant byte address 0x4 - core index']
  #allocation1 [shape = 'u32[144,128]{1,0:T(1,128)}', space=vmem, size = 0x12000, scoped, tag = 'internal scratch']
  %s0 = inlined_call_operand.vmem [shape: f32[2,16,8], index: 0, kind: input, shape index: {}]
  %s1 = inlined_call_operand.vmem [shape: f32[16,128], index: 1, kind: input, shape index: {}]
  %s2 = inlined_call_operand.hbm [shape: f32[1,1,8], index: 2, kind: output, shape index: {0}]
  %s3 = inlined_call_operand.hbm [shape: f32[1,128], index: 3, kind: output, shape index: {1}]
  %4 = xla_tuple %s2, %s3
  %s5 = sld [smem:[#allocation0]]
  $region53: #{tpu_custom_call.1} parent=0
    _
  %s7 = ssub.s32 1, %s5
  %s8 = scalar_select 0, %s7, %s5
  $region1: #{tpu_custom_call.1} parent=0
    #allocation2 [shape = 'u8[512]{0}', space=vmem, size = 0x400, scoped, tag = 'output window, operand 0, single buffered']
    #allocation3 [shape = 's32[2]{0}', space=sflag, size = 0x8, scoped, tag = 'scoped memory for tpu_custom_call.1']
    #allocation4 [shape = 'u8[512]{0}', space=vmem, size = 0x400, scoped, tag = 'output window, operand 1, single buffered']
    #allocation5 [shape = 's32[1]{0}', space=sflag, size = 0x4, scoped, tag = 'scoped memory for tpu_custom_call.1']
    %9 = vsyncpa [#allocation3], 0
    %10 = vsyncpa [#allocation5], 0
    loop: start=0, step=1, limit=4
    $region2: #{tpu_custom_call.1} parent=1 // loop_pre_header
      _
    $region3: #{tpu_custom_call.1} parent=1 // loop_header
      %s12 = sphi 0, %s16
      %p13 = scmp.ge.s32.totalorder %s12, 4
      %s19 = sphi 0, %s31
      %s20 = sphi 0, %s27
      %s21 = sphi 0, %s19
      %s22 = sphi 0, %s20
      %s23 = sphi 0, %s21
      %s24 = sphi 0, %s22
      %s36 = sphi 0, %s38
      %s39 = sphi 0, %s36
      %s40 = sphi 0, %s39
      %s56 = sphi 0, %s40
      %s60 = sphi 0, %s60
      %s62 = sphi 0, %s60
      %s63 = sphi 0, %s62
      %s77 = sphi 0, %s63
      %s81 = sphi 0, %s81
      %s83 = sphi 0, %s81
      %s84 = sphi 0, %s83
      %s98 = sphi 0, %s84
      %s102 = sphi 0, %s102
      %s104 = sphi 0, %s102
      %s105 = sphi 0, %s104
      %s119 = sphi 0, %s105
    $region4: #{tpu_custom_call.1} parent=1 // loop_header_branch
      %15 = sbr.rel (%p13) target = $region8
    $region5: #{tpu_custom_call.1} parent=1 // loop_body
      %s17 = ssub.s32 %s12, 1
      %s18 = ssub.s32 %s12, 2
      %s25 = sadd.s32 1, %s20
      %p26 = scmp.ge.s32.totalorder %s25, 1
      %s27 = scalar_select %p26, 0, %s25
      %s28 = sadd.s32 1, %s19
      %s29 = scalar_select %p26, %s28, %s19
      %p30 = scmp.ge.s32.totalorder %s29, 2
      %s31 = scalar_select %p30, 0, %s29
      %s32 = ssub.s32 %s19, %s31
      %s33 = ssub.s32 %s20, %s27
      %s34 = sor.u32 %s32, %s33
      %p35 = scmp.eq.s32.totalorder %s34, 0
      %s37 = sadd.s32 %s36, 1
      %s38 = scalar_select %p35, %s36, %s37
      %p41 = pneg %p35
      %p42 = scmp.eq.s32.totalorder %s12, 1
      %p43 = por %p41, %p42
      %p44 = scmp.ne.s32.totalorder %s36, %s39
      %p45 = scmp.eq.s32.totalorder %s12, 0
      %p46 = por %p44, %p45
      %p47 = scmp.ne.s32.totalorder %s36, %s39
      %p48 = scmp.eq.s32.totalorder %s17, 1
      %p49 = por %p47, %p48
      %p50 = scmp.ne.s32.totalorder %s39, %s40
      %p51 = scmp.eq.s32.totalorder %s17, 0
      %p52 = por %p50, %p51
      %p53 = scmp.ne.s32.totalorder %s39, %s40
      %p54 = scmp.eq.s32.totalorder %s18, 1
      %p55 = por %p53, %p54
      %p57 = scmp.ne.s32.totalorder %s40, %s56
      %p58 = scmp.eq.s32.totalorder %s18, 0
      %p59 = por %p57, %p58
      %s61 = sadd.s32 %s60, 1
      %p64 = scmp.eq.s32.totalorder %s12, 1
      %p65 = scmp.ne.s32.totalorder %s60, %s62
      %p66 = scmp.eq.s32.totalorder %s12, 0
      %p67 = por %p65, %p66
      %p68 = scmp.ne.s32.totalorder %s60, %s62
      %p69 = scmp.eq.s32.totalorder %s17, 1
      %p70 = por %p68, %p69
      %p71 = scmp.ne.s32.totalorder %s62, %s63
      %p72 = scmp.eq.s32.totalorder %s17, 0
      %p73 = por %p71, %p72
      %p74 = scmp.ne.s32.totalorder %s62, %s63
      %p75 = scmp.eq.s32.totalorder %s18, 1
      %p76 = por %p74, %p75
      %p78 = scmp.ne.s32.totalorder %s63, %s77
      %p79 = scmp.eq.s32.totalorder %s18, 0
      %p80 = por %p78, %p79
      %s82 = sadd.s32 %s81, 1
      %p85 = scmp.eq.s32.totalorder %s12, 1
      %p86 = scmp.ne.s32.totalorder %s81, %s83
      %p87 = scmp.eq.s32.totalorder %s12, 0
      %p88 = por %p86, %p87
      %p89 = scmp.ne.s32.totalorder %s81, %s83
      %p90 = scmp.eq.s32.totalorder %s17, 1
      %p91 = por %p89, %p90
      %p92 = scmp.ne.s32.totalorder %s83, %s84
      %p93 = scmp.eq.s32.totalorder %s17, 0
      %p94 = por %p92, %p93
      %p95 = scmp.ne.s32.totalorder %s83, %s84
      %p96 = scmp.eq.s32.totalorder %s18, 1
      %p97 = por %p95, %p96
      %p99 = scmp.ne.s32.totalorder %s84, %s98
      %p100 = scmp.eq.s32.totalorder %s18, 0
      %p101 = por %p99, %p100
      %s103 = sadd.s32 %s102, 1
      %p106 = scmp.eq.s32.totalorder %s12, 1
      %p107 = scmp.ne.s32.totalorder %s102, %s104
      %p108 = scmp.eq.s32.totalorder %s12, 0
      %p109 = por %p107, %p108
      %p110 = scmp.ne.s32.totalorder %s102, %s104
      %p111 = scmp.eq.s32.totalorder %s17, 1
      %p112 = por %p110, %p111
      %p113 = scmp.ne.s32.totalorder %s104, %s105
      %p114 = scmp.eq.s32.totalorder %s17, 0
      %p115 = por %p113, %p114
      %p116 = scmp.ne.s32.totalorder %s104, %s105
      %p117 = scmp.eq.s32.totalorder %s18, 1
      %p118 = por %p116, %p117
      %p120 = scmp.ne.s32.totalorder %s105, %s119
      %p121 = scmp.eq.s32.totalorder %s18, 0
      %p122 = por %p120, %p121
      %p123 = scmp.le.s32.totalorder 1, %s12
      %p124 = scmp.lt.s32.totalorder %s12, 3
      %p125 = pnand %p123, %p124
      %p126 = pneg %p125
      // Predicated region
      $region9: #{tpu_custom_call.1} parent=5 // pred_check
        _
      $region10: #{tpu_custom_call.1} parent=5 // pred_check_branch
        %128 = sbr.rel (%p125) target = $region12
      $region11: #{tpu_custom_call.1} parent=5 // pred_region
        %s129 = ssub.s32 %s12, 1
        // Predicated region
        $region13: #{tpu_custom_call.1} parent=11 // pred_check
          %p130 = pneg %p73
        $region14: #{tpu_custom_call.1} parent=11 // pred_check_branch
          %132 = sbr.rel (%p130) target = $region16
        $region15: #{tpu_custom_call.1} parent=11 // pred_region
          _
        $region16: #{tpu_custom_call.1} parent=11 // pred_fallthru
          _
      $region12: #{tpu_custom_call.1} parent=5 // pred_fallthru
        _
      %p133 = scmp.lt.s32.totalorder %s12, 2
      // Predicated region
      $region17: #{tpu_custom_call.1} parent=5 // pred_check
        %p134 = pneg %p133
      $region18: #{tpu_custom_call.1} parent=5 // pred_check_branch
        %136 = sbr.rel (%p134) target = $region20
      $region19: #{tpu_custom_call.1} parent=5 // pred_region
        // Predicated region
        $region21: #{tpu_custom_call.1} parent=19 // pred_check
          %p137 = pneg %p46
        $region22: #{tpu_custom_call.1} parent=19 // pred_check_branch
          %139 = sbr.rel (%p137) target = $region24
        $region23: #{tpu_custom_call.1} parent=19 // pred_region
          %s140 = smul.u32 2, %s20
          %p141 = scmp.lt.s32.totalorder %s19, 1
          %s142 = scalar_select %p141, %s19, 1
          %p143 = scmp.lt.s32.totalorder %s140, 1
          %s144 = scalar_select %p143, %s140, 1
          %s145 = smul.addr %s142, 2
          %s146 = sadd.s32 %s144, %s145
          %s147 = smul.addr %s146, 8
          %s148 = scalar_lea.vmem %s0, %s147
          %s149 = smul.u32 2, %s20
        $region24: #{tpu_custom_call.1} parent=19 // pred_fallthru
          _
      $region20: #{tpu_custom_call.1} parent=5 // pred_fallthru
        _
      %p150 = scmp.le.s32.totalorder 1, %s12
      %p151 = scmp.lt.s32.totalorder %s12, 3
      %p152 = pnand %p150, %p151
      %p153 = pneg %p152
      // Predicated region
      $region25: #{tpu_custom_call.1} parent=5 // pred_check
        _
      $region26: #{tpu_custom_call.1} parent=5 // pred_check_branch
        %155 = sbr.rel (%p152) target = $region28
      $region27: #{tpu_custom_call.1} parent=5 // pred_region
        %s156 = ssub.s32 %s12, 1
        %s157 = smul.u32 2, %s22
        %p158 = scmp.lt.s32.totalorder %s21, 1
        %s159 = scalar_select %p158, %s21, 1
        %p160 = scmp.lt.s32.totalorder %s157, 1
        %s161 = scalar_select %p160, %s157, 1
        %s162 = smul.addr %s159, 2
        %s163 = sadd.s32 %s161, %s162
        %s164 = smul.addr %s163, 8
        %s165 = scalar_lea.vmem %s0, %s164
        %p166 = pneg %p52
        %p167 = pneg %p49
        %p168 = pneg %p73
        %p169 = pneg %p70
        %p170 = pneg %p94
        %p171 = pneg %p91
        %p172 = pneg %p115
        %p173 = pneg %p112
        %s174 = smul.u32 2, %s22
        %p175 = scmp.lt.s32.totalorder %s21, 1
        %s176 = scalar_select %p175, %s21, 1
        %p177 = scmp.lt.s32.totalorder %s174, 1
        %s178 = scalar_select %p177, %s174, 1
        %s179 = smul.addr %s176, 2
        %s180 = sadd.s32 %s178, %s179
        %s181 = smul.addr %s180, 8
        %s182 = scalar_lea.vmem %s0, %s181
        %s183 = smul.u32 2, %s22
        %p184 = scmp.eq.s32.totalorder %s21, 0
        %p185 = scmp.eq.s32.totalorder %s22, 0
        %p186 = pnand %p184, %p185
        %p187 = pneg %p186
        // Predicated region
        $region29: #{tpu_custom_call.1} parent=27 // pred_check
          _
        $region30: #{tpu_custom_call.1} parent=27 // pred_check_branch
          %189 = sbr.rel (%p186) target = $region32
        $region31: #{tpu_custom_call.1} parent=27 // pred_region
          %vm190 = vcmask 57344
          %191 = vst.msk [vmem:[#allocation2] sm:$0x1] %vm190, 0.0
          %v192 = vld [vmem:[%s1] sm:$0xff]
          %v193 = vld [vmem:[%s1 + $0x8] sm:$0xff]
          %v194 = vmul.f32 %v192, 0.5
          %v196 = vrot.slane %v194, 2
          %v198 = vsub.f32 %v192, %v196
          %v199 = vadd.f32 %v192, %v196
          %v200 = vsub.f32 %v199, %v198
          %v202 = vrot.slane %v200, 1
          %v204 = vmul.f32 %v200, %v202
          %v206 = vrot.slane %v199, 4
          %v208 = vmin.f32 %v199, %v206
          %v210 = vrot.slane %v198, 4
          %v212 = vmax.f32 %v198, %v210
          %v213 = vsub.f32 %v208, %v212
          %v214 = vmax.f32 %v213, 0.0
          %v216 = vrot.slane %v214, 1
          %v218 = vmul.f32 %v214, %v216
          %v220 = vrot.slane %v204, 4
          %v222 = vadd.f32 %v204, %v220
          %v223 = vsub.f32 %v222, %v218
          %vm224 = vcmp.gt.f32.partialorder %v223, 0.0
          %v225 = vsel %vm224, %v223, 1.0
          %v226 = vrcp.pop %v225
          %v227 = vmul.f32 %v218, %v226
          %v228 = vmax.f32 %v199, %v206
          %v229 = vmin.f32 %v198, %v210
          %v230 = vsub.f32 %v228, %v229
          %v232 = vrot.slane %v230, 1
          %v234 = vmul.f32 %v230, %v232
          %v235 = vsub.f32 %v234, %v223
          %vm236 = vcmp.gt.f32.partialorder %v234, 0.0
          %v237 = vsel %vm236, %v234, 1.0
          %v238 = vrcp.pop %v237
          %v239 = vmul.f32 %v235, %v238
          %v240 = vsub.f32 %v227, %v239
          %v242 = vrot.slane %v192, 4
          %v244 = vsub.f32 %v192, %v242
          %v245 = vand.u32 2147483647, %v244
          %v246 = vlaneseq
          %v247 = vshrl.u32 %v246, 7
          %v248 = vsub.s32 1, %v247
          %v249 = vrot.slane %v193, %v248
          %v250 = vmul.f32 %v245, %v249
          %vm251 = vcmask 1043456
          %v252 = vsel %vm251, %v250, 0.0
          %253 = vadd.xlane.f32.xlu0 %v252
          %v254 = vpop.xlane.xlu0 %253
          %v255 = vrot.slane %v254, 4
          %v256 = vadd.f32 %v254, %v255
          %v257 = vrot.slane %v256, 2
          %v258 = vadd.f32 %v256, %v257
          %v259 = vrot.slane %v258, 1
          %v260 = vadd.f32 %v258, %v259
          %s261 = vtos %v260
          %v262 = vsub.f32 1.0, %v240
          %v264 = vrot.slane %v193, 1
          %v266 = vmul.f32 %v262, %v264
          %vm267 = vcmask 1040384
          %v268 = vsel %vm267, %v266, 0.0
          %269 = vadd.xlane.f32.xlu0 %v268
          %v270 = vpop.xlane.xlu0 %269
          %v271 = vrot.slane %v270, 4
          %v272 = vadd.f32 %v270, %v271
          %v273 = vrot.slane %v272, 2
          %v274 = vadd.f32 %v272, %v273
          %v275 = vrot.slane %v274, 1
          %v276 = vadd.f32 %v274, %v275
          %s277 = vtos %v276
          %v278 = vand.u32 2147483647, %v193
          %v279 = vsub.f32 0.0, %v278
          %v280 = vmul.f32 %v279, 1.442695
          %v281 = vpow.pop %v280
          %v282 = vadd.f32 %v281, 1.0
          %v283 = vrcp.pop %v282
          %v284 = vmul.f32 %v282, %v283
          %v285 = vsub.f32 2.0, %v284
          %v286 = vmul.f32 %v283, %v285
          %vm287 = vcmp.ge.f32.partialorder %v193, 0.0
          %v288 = vmul.f32 %v281, %v286
          %v289 = vsel %vm287, %v286, %v288
          %v290 = vadd.f32 %v281, 1.0
          %v291 = vlog2.pop %v290
          %v292 = vmul.f32 %v291, 0.6931472
          %v293 = vmul.f32 -0.5, %v281
          %v294 = vadd.f32 %v293, 1.0
          %v295 = vmul.f32 %v294, %v281
          %v296 = vand.u32 2147483647, %v281
          %vm297 = vcmp.lt.f32.partialorder %v296, 0.0004427343
          %v298 = vsel %vm297, %v295, %v292
          %v299 = vmax.f32 %v193, 0.0
          %v300 = vadd.f32 %v299, %v298
          %v301 = vsub.f32 0.0, %v193
          %v302 = vmax.f32 %v301, 0.0
          %v303 = vadd.f32 %v302, %v298
          %v304 = vmax.f32 %v227, 0.01
          %v305 = vlog2.pop %v289
          %v306 = vmul.f32 %v305, 0.6931472
          %v307 = vmul.f32 %v306, 0.25
          %v308 = vlog2.pop %v304
          %v309 = vmul.f32 %v308, 0.6931472
          %v310 = vmul.f32 %v309, 0.75
          %v311 = vadd.f32 %v307, %v310
          %v312 = vmul.f32 %v311, 1.442695
          %v313 = vpow.pop %v312
          %v314 = vmax.f32 %v313, 0.1
          %v315 = vsub.f32 %v314, %v289
          %v316 = vmul.f32 %v315, %v315
          %v317 = vmul.f32 %v316, %v303
          %v318 = vmul.f32 %v289, %v289
          %v319 = vmul.f32 %v314, %v318
          %v320 = vmul.f32 %v319, %v300
          %v321 = vsub.f32 %v317, %v320
          %v322 = vmul.f32 %v321, %v264
          %v323 = vsel %vm267, %v322, 0.0
          %324 = vadd.xlane.f32.xlu0 %v323
          %v325 = vpop.xlane.xlu0 %324
          %v326 = vrot.slane %v325, 4
          %v327 = vadd.f32 %v325, %v326
          %v328 = vrot.slane %v327, 2
          %v329 = vadd.f32 %v327, %v328
          %v330 = vrot.slane %v329, 1
          %v331 = vadd.f32 %v329, %v330
          %s332 = vtos %v331
          %v333 = vlaneseq
          %v334 = vand.u32 %v333, 127
          %vm335 = vcmp.eq.s32.totalorder %v334, 0
          %v336 = vstv %s261
          %v337 = vsel %vm335, %v336, 0.0
          %vm338 = vcmp.eq.s32.totalorder %v334, 1
          %v339 = vstv %s277
          %v340 = vsel %vm338, %v339, 0.0
          %v341 = vadd.f32 %v337, %v340
          %vm342 = vcmp.eq.s32.totalorder %v334, 2
          %v343 = vstv %s332
          %v344 = vsel %vm342, %v343, 0.0
          %v345 = vadd.f32 %v341, %v344
          %346 = vst [vmem:[#allocation4] sm:$0x1] %v345
        $region32: #{tpu_custom_call.1} parent=27 // pred_fallthru
          _
        %v347 = vld [vmem:[%s182] sm:$0xff]
        %v348 = vld [vmem:[%s182 + $0x8] sm:$0xff]
        %v349 = vand.u32 2147483647, %v347
        %v350 = vand.u32 2147483647, %v348
        %v351 = vsub.f32 0.0, %v349
        %v352 = vsub.f32 0.0, %v350
        %v353 = vmul.f32 %v351, 1.442695
        %v354 = vpow.pop %v353
        %v355 = vmul.f32 %v352, 1.442695
        %v356 = vpow.pop %v355
        %v357 = vadd.f32 %v354, 1.0
        %v358 = vadd.f32 %v356, 1.0
        %v359 = vrcp.pop %v357
        %v360 = vrcp.pop %v358
        %v361 = vmul.f32 %v357, %v359
        %v362 = vmul.f32 %v358, %v360
        %v363 = vsub.f32 2.0, %v361
        %v364 = vsub.f32 2.0, %v362
        %v365 = vmul.f32 %v359, %v363
        %v366 = vmul.f32 %v360, %v364
        %vm367 = vcmp.ge.f32.partialorder %v347, 0.0
        %vm368 = vcmp.ge.f32.partialorder %v348, 0.0
        %v369 = vmul.f32 %v354, %v365
        %v370 = vmul.f32 %v356, %v366
        %v371 = vsel %vm367, %v365, %v369
        %v372 = vsel %vm368, %v366, %v370
        %v373 = vadd.f32 %v354, 1.0
        %v374 = vlog2.pop %v373
        %v375 = vmul.f32 %v374, 0.6931472
        %v376 = vmul.f32 -0.5, %v354
        %v377 = vadd.f32 %v376, 1.0
        %v378 = vmul.f32 %v377, %v354
        %v379 = vand.u32 2147483647, %v354
        %vm380 = vcmp.lt.f32.partialorder %v379, 0.0004427343
        %v381 = vsel %vm380, %v378, %v375
        %v382 = vadd.f32 %v356, 1.0
        %v383 = vlog2.pop %v382
        %v384 = vmul.f32 %v383, 0.6931472
        %v385 = vmul.f32 -0.5, %v356
        %v386 = vadd.f32 %v385, 1.0
        %v387 = vmul.f32 %v386, %v356
        %v388 = vand.u32 2147483647, %v356
        %vm389 = vcmp.lt.f32.partialorder %v388, 0.0004427343
        %v390 = vsel %vm389, %v387, %v384
        %v391 = vmax.f32 %v347, 0.0
        %v392 = vmax.f32 %v348, 0.0
        %v393 = vadd.f32 %v391, %v381
        %v394 = vadd.f32 %v392, %v390
        %v395 = vmul.f32 %v371, %v371
        %v396 = vmul.f32 %v372, %v372
        %v397 = vmul.f32 %v395, %v393
        %v398 = vmul.f32 %v396, %v394
        %v399 = vld [vmem:[#allocation2] sm:$0x1]
        %vm400 = vcmask 64512
        %v401 = vsel %vm400, %v397, 0.0
        %v402 = vsel %vm400, %v398, 0.0
        %v403 = vadd.f32 %v401, %v402
        %v404 = vrot.slane %v403, 4
        %v405 = vadd.f32 %v403, %v404
        %v406 = vrot.slane %v405, 2
        %v407 = vadd.f32 %v405, %v406
        %v408 = vrot.slane %v407, 1
        %v409 = vadd.f32 %v407, %v408
        %v410 = vadd.f32 %v399, %v409
        %vm411 = vcmask 57344
        %412 = vst.msk [vmem:[#allocation2] sm:$0x1] %vm411, %v410
        // Predicated region
        $region33: #{tpu_custom_call.1} parent=27 // pred_check
          %p413 = pneg %p91
        $region34: #{tpu_custom_call.1} parent=27 // pred_check_branch
          %415 = sbr.rel (%p413) target = $region36
        $region35: #{tpu_custom_call.1} parent=27 // pred_region
          %s417 = ssub.s32 16, 16
          %418 = vsyncadd [#allocation3], %s417
          %s420 = sshll.u32 [#allocation2], 4
          %s421 = int_to_ptr.vmem [resolvable:$true] %s420
          %423 = dma.vmem_to_hbm [thread:$0]  %s421, 16, %s2, [#allocation3]
        $region36: #{tpu_custom_call.1} parent=27 // pred_fallthru
          _
        // Predicated region
        $region37: #{tpu_custom_call.1} parent=27 // pred_check
          %p424 = pneg %p112
        $region38: #{tpu_custom_call.1} parent=27 // pred_check_branch
          %426 = sbr.rel (%p424) target = $region40
        $region39: #{tpu_custom_call.1} parent=27 // pred_region
          %s428 = ssub.s32 16, 16
          %429 = vsyncadd [#allocation5], %s428
          %s431 = sshll.u32 [#allocation4], 4
          %s432 = int_to_ptr.vmem [resolvable:$true] %s431
          %434 = dma.vmem_to_hbm [thread:$0]  %s432, 16, %s3, [#allocation5]
        $region40: #{tpu_custom_call.1} parent=27 // pred_fallthru
          _
        // Predicated region
        $region41: #{tpu_custom_call.1} parent=27 // pred_check
          %p435 = pneg %p91
        $region42: #{tpu_custom_call.1} parent=27 // pred_check_branch
          %437 = sbr.rel (%p435) target = $region44
        $region43: #{tpu_custom_call.1} parent=27 // pred_region
          %438 = dma.done [#allocation3], 16
        $region44: #{tpu_custom_call.1} parent=27 // pred_fallthru
          _
        // Predicated region
        $region45: #{tpu_custom_call.1} parent=27 // pred_check
          %p439 = pneg %p112
        $region46: #{tpu_custom_call.1} parent=27 // pred_check_branch
          %441 = sbr.rel (%p439) target = $region48
        $region47: #{tpu_custom_call.1} parent=27 // pred_region
          %442 = dma.done [#allocation5], 16
        $region48: #{tpu_custom_call.1} parent=27 // pred_fallthru
          _
      $region28: #{tpu_custom_call.1} parent=5 // pred_fallthru
        _
      %p443 = scmp.le.s32.totalorder 2, %s12
      // Predicated region
      $region49: #{tpu_custom_call.1} parent=5 // pred_check
        %p444 = pneg %p443
      $region50: #{tpu_custom_call.1} parent=5 // pred_check_branch
        %446 = sbr.rel (%p444) target = $region52
      $region51: #{tpu_custom_call.1} parent=5 // pred_region
        %s447 = ssub.s32 %s12, 2
      $region52: #{tpu_custom_call.1} parent=5 // pred_fallthru
        _
    $region6: #{tpu_custom_call.1} parent=1 // loop_footer
      %s16 = sadd.s32 1, %s12
    $region7: #{tpu_custom_call.1} parent=1 // loop_footer_branch
      %11 = sbr.rel target = $region3
    $region8: #{tpu_custom_call.1} parent=1 // loop_exit
      _
    %448 = vsyncpa [#allocation3], 1
    %s449 = scalar_lea.sflag [#allocation3], 1
    %450 = vsyncpa %s449, 1
    %451 = vsyncpa [#allocation5], 1

</llo_original>
